<compile_context>
chip_gen: v7x
topology: tpu7x:2x2x1
jax: 0.10.0
libtpu: 0.0.40
codegen_flags: <defaults>
</compile_context>

<pallas_src>
import functools

import jax
import jax.numpy as jnp
from jax.experimental import pallas as pl
from jax.experimental.pallas import tpu as pltpu


def _round_up(x, m):
    return (x + m - 1) // m * m


@functools.lru_cache(maxsize=1)
def _vmem_capacity_bytes():
    try:
        return int(pltpu.get_tpu_info().vmem_capacity_bytes)
    except Exception:
        return 64 * 2**20  # conservative (v7x per-TC) fallback


# ----------------------------------------------------------------------------
# Kernels
# ----------------------------------------------------------------------------
def _fused_kernel(x_ref, wt_ref, b_ref, o_ref):
    """Single-pass path (whole vocab row resident in one tile).

    logits = x @ W^T + b on the MXU (f32 accumulation), log_softmax over the
    full row, output written directly in the caller's dtype.
    """
    logits = jnp.dot(x_ref[...], wt_ref[...], preferred_element_type=jnp.float32)
    logits = logits + b_ref[...].astype(jnp.float32)
    m = jnp.max(logits, axis=-1, keepdims=True)
    lse = m + jnp.log(jnp.sum(jnp.exp(logits - m), axis=-1, keepdims=True))
    o_ref[...] = (logits - lse).astype(o_ref.dtype)


def _logits_stats_kernel(x_ref, wt_ref, b_ref, logits_ref, lse_ref, m_sc, l_sc,
                         *, v_total, tv, mask_v):
    """Pass 1 of the two-pass path.  Grid = (M tiles, V tiles); V is 'arbitrary'.

    Per step: (tm, tv) logits tile on the MXU (f32 acc), online-softmax running
    max / sum-exp kept in f32 VMEM scratch, logits streamed to HBM in a narrow
    dtype (bf16 by default).  Per-row logsumexp emitted at the last V step.
    """
    j = pl.program_id(1)

    @pl.when(j == 0)
    def _():
        m_sc[...] = jnp.full_like(m_sc, -jnp.inf)
        l_sc[...] = jnp.zeros_like(l_sc)

    logits = jnp.dot(x_ref[...], wt_ref[...], preferred_element_type=jnp.float32)
    logits = logits + b_ref[...].astype(jnp.float32)

    if mask_v:  # static branch: only emitted when V % tv != 0
        col = jax.lax.broadcasted_iota(jnp.int32, logits.shape, 1) + j * tv
        logits = jnp.where(col < v_total, logits, -jnp.inf)

    # Stats are taken from the f32 logits *before* the narrowing store, so the
    # logsumexp precision is unaffected by the bf16 intermediate.
    m_prev = m_sc[...]
    m_new = jnp.maximum(m_prev, jnp.max(logits, axis=-1, keepdims=True))
    l_sc[...] = l_sc[...] * jnp.exp(m_prev - m_new) + jnp.sum(
        jnp.exp(logits - m_new), axis=-1, keepdims=True)
    m_sc[...] = m_new

    logits_ref[...] = logits.astype(logits_ref.dtype)

    @pl.when(j == pl.num_programs(1) - 1)
    def _():
        lse_ref[...] = m_sc[...] + jnp.log(l_sc[...])


def _normalize_kernel(logits_ref, lse_ref, o_ref):
    """Pass 2: logp = logits - logsumexp(row), written in the output dtype."""
    o_ref[...] = (logits_ref[...].astype(jnp.float32) - lse_ref[...]).astype(o_ref.dtype)


# ----------------------------------------------------------------------------
# Wrapper
# ----------------------------------------------------------------------------
@functools.partial(
    jax.jit,
    static_argnames=("block_m", "block_v", "compute_dtype", "logits_dtype"))
def projection_forward_t(x, w_t, b, *, block_m=512, block_v=1024,
                         compute_dtype=jnp.bfloat16,
                         logits_dtype=jnp.bfloat16):
    """log_softmax(x @ w_t + b, axis=-1).

    x:   (..., d_model)
    w_t: (d_model, vocab)  -- Linear weight pre-transposed (W^T); ideally
                              pre-stored in `compute_dtype` so no per-call
                              cast of the full weight is needed.
    b:   (vocab,)
    """
    out_dtype = x.dtype
    *lead, D = x.shape
    Dw, V = w_t.shape
    if Dw != D:
        raise ValueError(f"w_t must be (d_model, vocab); got {w_t.shape} for d_model={D}")

    M = 1
    for s in lead:
        M *= s
    x2 = x.reshape(M, D)
    b2 = b.reshape(1, V)

    if compute_dtype is not None:
        # No-ops (elided by XLA) when the caller already supplies these dtypes.
        x2 = x2.astype(compute_dtype)
        w_t = w_t.astype(compute_dtype)

    in_isz = jnp.dtype(x2.dtype).itemsize
    w_isz = jnp.dtype(w_t.dtype).itemsize
    b_isz = jnp.dtype(b2.dtype).itemsize
    l_isz = jnp.dtype(logits_dtype).itemsize
    o_isz = jnp.dtype(out_dtype).itemsize

    # ---- tile selection -----------------------------------------------------
    tm = min(block_m, _round_up(M, 8))
    tv = min(block_v, _round_up(V, 128))
    # Give both v7x TensorCores a row tile even for tiny M (decode shapes).
    if pl.cdiv(M, tm) < 2 and M > 8:
        tm = max(8, _round_up(pl.cdiv(M, 2), 8))

    # Generation-aware VMEM budget (64 MiB/TC on v7x, 128 MiB on v5e/v6e).
    budget = (_vmem_capacity_bytes() * 3) // 4

    def _est(tm_, tv_):
        return (2 * tm_ * D * in_isz                 # x tile (double-buffered)
                + 2 * D * tv_ * w_isz                # W^T tile
                + 2 * tv_ * b_isz                    # bias tile
                + 2 * tm_ * tv_ * max(l_isz, o_isz)  # streamed (tm, tv) out tile
                + tm_ * tv_ * 4                      # in-kernel f32 logits temp
                + 6 * tm_ * 4)                       # lse out + m/l scratch

    while _est(tm, tv) > budget and tv > 128:
        tv = max(128, tv // 2)
    while _est(tm, tv) > budget and tm > 8:
        tm = max(8, tm // 2)

    vmem_limit = int(min(budget, max(32 * 2**20, _est(tm, tv) + (4 << 20))))

    n_vt = pl.cdiv(V, tv)
    grid_m = pl.cdiv(M, tm)

    cost = pl.CostEstimate(
        flops=2 * M * D * V,
        transcendentals=M * V,
        bytes_accessed=(M * D * in_isz + D * V * w_isz + V * b_isz
                        + (0 if n_vt == 1 else 3 * M * V * l_isz)
                        + M * V * o_isz),
    )

    # ---- single-pass fused path (whole vocab row fits in one tile) ----------
    if n_vt == 1:
        out2 = pl.pallas_call(
            _fused_kernel,
            out_shape=jax.ShapeDtypeStruct((M, V), out_dtype),
            grid_spec=pltpu.PrefetchScalarGridSpec(
                num_scalar_prefetch=0,
                grid=(grid_m,),
                in_specs=[
                    pl.BlockSpec((tm, D), lambda i: (i, 0)),
                    pl.BlockSpec((D, V), lambda i: (0, 0)),
                    pl.BlockSpec((1, V), lambda i: (0, 0)),
                ],
                out_specs=pl.BlockSpec((tm, V), lambda i: (i, 0)),
            ),
            compiler_params=pltpu.CompilerParams(
                dimension_semantics=("parallel",),
                vmem_limit_bytes=vmem_limit),
            cost_estimate=cost,
        )(x2, w_t, b2)
        return out2.reshape(*lead, V)

    # ---- two-pass path (vocab tiled, online softmax) -------------------------
    mask_v = (V % tv) != 0

    logits, lse = pl.pallas_call(
        functools.partial(_logits_stats_kernel, v_total=V, tv=tv, mask_v=mask_v),
        out_shape=(
            jax.ShapeDtypeStruct((M, V), logits_dtype),
            jax.ShapeDtypeStruct((M, 1), jnp.float32),
        ),
        grid_spec=pltpu.PrefetchScalarGridSpec(
            num_scalar_prefetch=0,
            grid=(grid_m, n_vt),
            in_specs=[
                pl.BlockSpec((tm, D), lambda i, j: (i, 0)),
                # If profiling shows exposed weight DMA on v7x, this spec can
                # take pipeline_mode=pl.Buffered(3) (one extra D x tv buffer).
                pl.BlockSpec((D, tv), lambda i, j: (0, j)),
                pl.BlockSpec((1, tv), lambda i, j: (0, j)),
            ],
            out_specs=(
                pl.BlockSpec((tm, tv), lambda i, j: (i, j)),
                pl.BlockSpec((tm, 1), lambda i, j: (i, 0)),
            ),
            scratch_shapes=[
                pltpu.VMEM((tm, 1), jnp.float32),
                pltpu.VMEM((tm, 1), jnp.float32),
            ],
        ),
        compiler_params=pltpu.CompilerParams(
            dimension_semantics=("parallel", "arbitrary"),
            vmem_limit_bytes=vmem_limit),
        cost_estimate=cost,
    )(x2, w_t, b2)

    # Pass 2: pure HBM-bound elementwise normalize with large lane-dense tiles;
    # writes the final log-probs unpadded, directly in the caller's dtype.
    tm2 = min(512, _round_up(M, 8))
    tv2 = min(2048, _round_up(V, 128))
    out2 = pl.pallas_call(
        _normalize_kernel,
        out_shape=jax.ShapeDtypeStruct((M, V), out_dtype),
        grid_spec=pltpu.PrefetchScalarGridSpec(
            num_scalar_prefetch=0,
            grid=(pl.cdiv(M, tm2), pl.cdiv(V, tv2)),
            in_specs=[
                pl.BlockSpec((tm2, tv2), lambda i, j: (i, j)),
                pl.BlockSpec((tm2, 1), lambda i, j: (i, 0)),
            ],
            out_specs=pl.BlockSpec((tm2, tv2), lambda i, j: (i, j)),
        ),
        compiler_params=pltpu.CompilerParams(
            dimension_semantics=("parallel", "parallel"),
            vmem_limit_bytes=vmem_limit),
    )(logits, lse)

    return out2.reshape(*lead, V)


def projection_forward(x, w, b, **kwargs):
    """PyTorch-layout convenience wrapper (w is (vocab, d_model)).

    Prefer pre-transposing (and pre-casting) the weight once outside the hot
    path and calling projection_forward_t directly.
    """
    return projection_forward_t(x, jnp.asarray(w).T, b, **kwargs)


if __name__ == "__main__":
    batch, seq, d_model, vocab = 2, 8, 32, 128

    key = jax.random.PRNGKey(0)
    kx, kw, kb = jax.random.split(key, 3)

    # Deterministic parameter init (mimic PyTorch Linear's uniform init range).
    bound = 1.0 / (d_model ** 0.5)
    w = jax.random.uniform(kw, (vocab, d_model), jnp.float32, -bound, bound)
    b = jax.random.uniform(kb, (vocab,), jnp.float32, -bound, bound)
    x = jax.random.normal(kx, (batch, seq, d_model), jnp.float32)

    # One-time weight prep outside the jitted hot path: transpose + bf16 cast.
    w_t = jnp.asarray(w.T, dtype=jnp.bfloat16)

    # Fused single-pass path.
    out = jax.block_until_ready(projection_forward_t(x, w_t, b))
    ref = jax.nn.log_softmax(x @ w.T + b, axis=-1)
    assert out.shape == (batch, seq, vocab)
    assert jnp.allclose(jnp.sum(jnp.exp(out), axis=-1), 1.0, atol=2e-2)
    assert jnp.max(jnp.abs(out - ref)) < 5e-2

    # Ragged rows and vocab (partial edge blocks), PyTorch-layout wrapper.
    x_r = jax.random.normal(kx, (3, 5, d_model), jnp.float32)
    w_r = jax.random.uniform(kw, (100, d_model), jnp.float32, -bound, bound)
    b_r = jax.random.uniform(kb, (100,), jnp.float32, -bound, bound)
    out_r = jax.block_until_ready(projection_forward(x_r, w_r, b_r))
    ref_r = jax.nn.log_softmax(x_r @ w_r.T + b_r, axis=-1)
    assert out_r.shape == (3, 5, 100)
    assert jnp.max(jnp.abs(out_r - ref_r)) < 5e-2

    # Multi-tile grid: exercises the two-pass online-softmax accumulation
    # across V tiles, multiple M tiles, and the ragged-vocab lane masking.
    vocab3 = 300
    w3 = jax.random.uniform(kw, (vocab3, d_model), jnp.float32, -bound, bound)
    b3 = jax.random.uniform(kb, (vocab3,), jnp.float32, -bound, bound)
    x3 = jax.random.normal(kx, (3, 5, d_model), jnp.float32)
    out3 = jax.block_until_ready(
        projection_forward_t(x3, jnp.asarray(w3.T, jnp.bfloat16), b3,
                             block_m=8, block_v=128))
    ref3 = jax.nn.log_softmax(x3 @ w3.T + b3, axis=-1)
    assert out3.shape == (3, 5, vocab3)
    assert jnp.max(jnp.abs(out3 - ref3)) < 5e-2

    print("KERNEL_OK")
</pallas_src>

<mosaic_0001>
module attributes {stable_mosaic.version = 11 : i64} {
  func.func @_fused_kernel(%arg0: i32, %arg1: memref<8x32xbf16, #tpu.memory_space<vmem>>, %arg2: memref<32x128xbf16, #tpu.memory_space<vmem>>, %arg3: memref<1x128xf32, #tpu.memory_space<vmem>>, %arg4: memref<8x128xf32, #tpu.memory_space<vmem>>) attributes {dimension_semantics = [#tpu.dimension_semantics<parallel>], iteration_bounds = array<i64: 2>, scalar_prefetch = 0 : i64, scratch_operands = 0 : i64, tpu.core_type = #tpu.core_type<tc>, window_params = [{transform_indices = @transform_0, window_bounds = array<i64: 8, 32>}, {pipeline_mode = #tpu.pipeline_mode<synchronous>, transform_indices = @transform_1, window_bounds = array<i64: 32, 128>}, {pipeline_mode = #tpu.pipeline_mode<synchronous>, transform_indices = @transform_2, window_bounds = array<i64: 1, 128>}, {transform_indices = @transform_3, window_bounds = array<i64: 8, 128>}]} {
    %c0 = arith.constant 0 : index
    %c0_0 = arith.constant 0 : index
    %0 = vector.load %arg1[%c0, %c0_0] : memref<8x32xbf16, #tpu.memory_space<vmem>>, vector<8x32xbf16>
    %c0_1 = arith.constant 0 : index
    %c0_2 = arith.constant 0 : index
    %1 = vector.load %arg2[%c0_1, %c0_2] : memref<32x128xbf16, #tpu.memory_space<vmem>>, vector<32x128xbf16>
    %cst = arith.constant dense<0.000000e+00> : vector<8x128xf32>
    %2 = tpu.matmul %0, %1, %cst {dimension_numbers = #tpu.dot_dimension_numbers<[1], [0], [0], [1], [0, 0, 1, 1], [], []>} : vector<8x32xbf16>, vector<32x128xbf16>, vector<8x128xf32> -> vector<8x128xf32>
    %c0_3 = arith.constant 0 : index
    %c0_4 = arith.constant 0 : index
    %3 = vector.load %arg3[%c0_3, %c0_4] : memref<1x128xf32, #tpu.memory_space<vmem>>, vector<1x128xf32>
    %4 = vector.broadcast %3 : vector<1x128xf32> to vector<8x128xf32>
    %5 = arith.addf %2, %4 : vector<8x128xf32>
    %cst_5 = arith.constant dense<0xFF800000> : vector<8xf32>
    %6 = vector.multi_reduction <maximumf>, %5, %cst_5 [1] : vector<8x128xf32> to vector<8xf32>
    %7 = vector.shape_cast %6 : vector<8xf32> to vector<8x1xf32>
    %8 = vector.broadcast %7 : vector<8x1xf32> to vector<8x128xf32>
    %9 = arith.subf %5, %8 : vector<8x128xf32>
    %10 = math.exp %9 : vector<8x128xf32>
    %cst_6 = arith.constant dense<0.000000e+00> : vector<8xf32>
    %11 = vector.multi_reduction <add>, %10, %cst_6 [1] : vector<8x128xf32> to vector<8xf32>
    %12 = vector.shape_cast %11 : vector<8xf32> to vector<8x1xf32>
    %13 = math.log %12 : vector<8x1xf32>
    %14 = arith.addf %7, %13 : vector<8x1xf32>
    %15 = vector.broadcast %14 : vector<8x1xf32> to vector<8x128xf32>
    %16 = arith.subf %5, %15 : vector<8x128xf32>
    %c0_7 = arith.constant 0 : index
    %c0_8 = arith.constant 0 : index
    %17 = vector.load %arg4[%c0_7, %c0_8] : memref<8x128xf32, #tpu.memory_space<vmem>>, vector<8x128xf32>
    tpu.vector_store %arg4[%c0_7, %c0_8], %16 {strides = array<i32>} : memref<8x128xf32, #tpu.memory_space<vmem>>, vector<8x128xf32>,
    return
  }
  func.func @transform_0(%arg0: i32) -> (i32, i32) {
    %c0_i32 = arith.constant 0 : i32
    %c0_i32_0 = arith.constant 0 : i32
    return %arg0, %c0_i32 : i32, i32
  }
  func.func @transform_1(%arg0: i32) -> (i32, i32) {
    %c0_i32 = arith.constant 0 : i32
    %c0_i32_0 = arith.constant 0 : i32
    %c0_i32_1 = arith.constant 0 : i32
    return %c0_i32, %c0_i32_0 : i32, i32
  }
  func.func @transform_2(%arg0: i32) -> (i32, i32) {
    %c0_i32 = arith.constant 0 : i32
    %c0_i32_0 = arith.constant 0 : i32
    %c0_i32_1 = arith.constant 0 : i32
    return %c0_i32, %c0_i32_0 : i32, i32
  }
  func.func @transform_3(%arg0: i32) -> (i32, i32) {
    %c0_i32 = arith.constant 0 : i32
    %c0_i32_0 = arith.constant 0 : i32
    return %arg0, %c0_i32 : i32, i32
  }
}

</mosaic_0001>

<llo_original>
// kernel: projection_forward_t.1
$region0: #{projection_forward_t.1}
  #allocation0 [shape = 'u32[]', space=smem, size = 0x4, offset = 0x4, fixed_abs, tag = 'smem constant byte address 0x4 - core index']
  #allocation1 [shape = 'u32[144,128]{1,0:T(1,128)}', space=vmem, size = 0x12000, scoped, tag = 'internal scratch']
  %s0 = inlined_call_operand.vmem [shape: bf16[16,32], index: 0, kind: input, shape index: {}]
  %s1 = inlined_call_operand.vmem [shape: bf16[32,128], index: 1, kind: input, shape index: {}]
  %s2 = inlined_call_operand.vmem [shape: f32[1,128], index: 2, kind: input, shape index: {}]
  %s3 = inlined_call_operand.hbm [shape: f32[16,128], index: 3, kind: output, shape index: {}]
  %s4 = sld [smem:[#allocation0]]
  $region45: #{projection_forward_t.1} parent=0
    _
  %s6 = ssub.s32 1, %s4
  %s7 = scalar_select 0, %s6, %s4
  $region1: #{projection_forward_t.1} parent=0
    #allocation2 [shape = 'u8[8192]{0}', space=vmem, size = 0x2000, scoped, tag = 'output window, operand 0']
    #allocation3 [shape = 's32[2]{0}', space=sflag, size = 0x8, scoped, tag = 'scoped memory for projection_forward_t.1']
    %8 = vsyncpa [#allocation3], 0
    %s9 = scalar_lea.sflag [#allocation3], 1
    %10 = vsyncpa %s9, 0
    loop: start=0, step=1, limit=4
    $region2: #{projection_forward_t.1} parent=1 // loop_pre_header
      _
    $region3: #{projection_forward_t.1} parent=1 // loop_header
      %s12 = sphi 0, %s16
      %p13 = scmp.ge.s32.totalorder %s12, 4
      %s22 = sphi 0, %s24
      %s25 = sphi 0, %s22
      %s26 = sphi 0, %s25
      %s42 = sphi 0, %s26
      %s46 = sphi 0, %s46
      %s48 = sphi 0, %s46
      %s49 = sphi 0, %s48
      %s63 = sphi 0, %s49
      %s67 = sphi 0, %s67
      %s69 = sphi 0, %s67
      %s70 = sphi 0, %s69
      %s84 = sphi 0, %s70
      %s90 = sphi 0, %s92
      %s93 = sphi 0, %s90
      %s94 = sphi 0, %s93
      %s110 = sphi 0, %s94
    $region4: #{projection_forward_t.1} parent=1 // loop_header_branch
      %15 = sbr.rel (%p13) target = $region8
    $region5: #{projection_forward_t.1} parent=1 // loop_body
      %s17 = ssub.s32 %s12, 1
      %s18 = ssub.s32 %s12, 2
      %s19 = sadd.s32 %s12, 1
      %s20 = ssub.s32 %s12, %s19
      %p21 = scmp.eq.s32.totalorder %s20, 0
      %s23 = sadd.s32 %s22, 1
      %s24 = scalar_select %p21, %s22, %s23
      %p27 = pneg %p21
      %p28 = scmp.eq.s32.totalorder %s12, 1
      %p29 = por %p27, %p28
      %p30 = scmp.ne.s32.totalorder %s22, %s25
      %p31 = scmp.eq.s32.totalorder %s12, 0
      %p32 = por %p30, %p31
      %p33 = scmp.ne.s32.totalorder %s22, %s25
      %p34 = scmp.eq.s32.totalorder %s17, 1
      %p35 = por %p33, %p34
      %p36 = scmp.ne.s32.totalorder %s25, %s26
      %p37 = scmp.eq.s32.totalorder %s17, 0
      %p38 = por %p36, %p37
      %p39 = scmp.ne.s32.totalorder %s25, %s26
      %p40 = scmp.eq.s32.totalorder %s18, 1
      %p41 = por %p39, %p40
      %p43 = scmp.ne.s32.totalorder %s26, %s42
      %p44 = scmp.eq.s32.totalorder %s18, 0
      %p45 = por %p43, %p44
      %s47 = sadd.s32 %s46, 1
      %p50 = scmp.eq.s32.totalorder %s12, 1
      %p51 = scmp.ne.s32.totalorder %s46, %s48
      %p52 = scmp.eq.s32.totalorder %s12, 0
      %p53 = por %p51, %p52
      %p54 = scmp.ne.s32.totalorder %s46, %s48
      %p55 = scmp.eq.s32.totalorder %s17, 1
      %p56 = por %p54, %p55
      %p57 = scmp.ne.s32.totalorder %s48, %s49
      %p58 = scmp.eq.s32.totalorder %s17, 0
      %p59 = por %p57, %p58
      %p60 = scmp.ne.s32.totalorder %s48, %s49
      %p61 = scmp.eq.s32.totalorder %s18, 1
      %p62 = por %p60, %p61
      %p64 = scmp.ne.s32.totalorder %s49, %s63
      %p65 = scmp.eq.s32.totalorder %s18, 0
      %p66 = por %p64, %p65
      %s68 = sadd.s32 %s67, 1
      %p71 = scmp.eq.s32.totalorder %s12, 1
      %p72 = scmp.ne.s32.totalorder %s67, %s69
      %p73 = scmp.eq.s32.totalorder %s12, 0
      %p74 = por %p72, %p73
      %p75 = scmp.ne.s32.totalorder %s67, %s69
      %p76 = scmp.eq.s32.totalorder %s17, 1
      %p77 = por %p75, %p76
      %p78 = scmp.ne.s32.totalorder %s69, %s70
      %p79 = scmp.eq.s32.totalorder %s17, 0
      %p80 = por %p78, %p79
      %p81 = scmp.ne.s32.totalorder %s69, %s70
      %p82 = scmp.eq.s32.totalorder %s18, 1
      %p83 = por %p81, %p82
      %p85 = scmp.ne.s32.totalorder %s70, %s84
      %p86 = scmp.eq.s32.totalorder %s18, 0
      %p87 = por %p85, %p86
      %s88 = ssub.s32 %s12, %s19
      %p89 = scmp.eq.s32.totalorder %s88, 0
      %s91 = sadd.s32 %s90, 1
      %s92 = scalar_select %p89, %s90, %s91
      %p95 = pneg %p89
      %p96 = scmp.eq.s32.totalorder %s12, 1
      %p97 = por %p95, %p96
      %p98 = scmp.ne.s32.totalorder %s90, %s93
      %p99 = scmp.eq.s32.totalorder %s12, 0
      %p100 = por %p98, %p99
      %p101 = scmp.ne.s32.totalorder %s90, %s93
      %p102 = scmp.eq.s32.totalorder %s17, 1
      %p103 = por %p101, %p102
      %p104 = scmp.ne.s32.totalorder %s93, %s94
      %p105 = scmp.eq.s32.totalorder %s17, 0
      %p106 = por %p104, %p105
      %p107 = scmp.ne.s32.totalorder %s93, %s94
      %p108 = scmp.eq.s32.totalorder %s18, 1
      %p109 = por %p107, %p108
      %p111 = scmp.ne.s32.totalorder %s94, %s110
      %p112 = scmp.eq.s32.totalorder %s18, 0
      %p113 = por %p111, %p112
      %p114 = scmp.le.s32.totalorder 1, %s12
      %p115 = scmp.lt.s32.totalorder %s12, 3
      %p116 = pnand %p114, %p115
      %p117 = pneg %p116
      // Predicated region
      $region9: #{projection_forward_t.1} parent=5 // pred_check
        _
      $region10: #{projection_forward_t.1} parent=5 // pred_check_branch
        %119 = sbr.rel (%p116) target = $region12
      $region11: #{projection_forward_t.1} parent=5 // pred_region
        %s120 = ssub.s32 %s12, 1
        // Predicated region
        $region13: #{projection_forward_t.1} parent=11 // pred_check
          %p121 = pneg %p59
        $region14: #{projection_forward_t.1} parent=11 // pred_check_branch
          %123 = sbr.rel (%p121) target = $region16
        $region15: #{projection_forward_t.1} parent=11 // pred_region
          _
        $region16: #{projection_forward_t.1} parent=11 // pred_fallthru
          _
        // Predicated region
        $region17: #{projection_forward_t.1} parent=11 // pred_check
          %p124 = pneg %p80
        $region18: #{projection_forward_t.1} parent=11 // pred_check_branch
          %126 = sbr.rel (%p124) target = $region20
        $region19: #{projection_forward_t.1} parent=11 // pred_region
          _
        $region20: #{projection_forward_t.1} parent=11 // pred_fallthru
          _
      $region12: #{projection_forward_t.1} parent=5 // pred_fallthru
        _
      %p127 = scmp.lt.s32.totalorder %s12, 2
      // Predicated region
      $region21: #{projection_forward_t.1} parent=5 // pred_check
        %p128 = pneg %p127
      $region22: #{projection_forward_t.1} parent=5 // pred_check_branch
        %130 = sbr.rel (%p128) target = $region24
      $region23: #{projection_forward_t.1} parent=5 // pred_region
        // Predicated region
        $region25: #{projection_forward_t.1} parent=23 // pred_check
          %p131 = pneg %p32
        $region26: #{projection_forward_t.1} parent=23 // pred_check_branch
          %133 = sbr.rel (%p131) target = $region28
        $region27: #{projection_forward_t.1} parent=23 // pred_region
          %p134 = scmp.lt.s32.totalorder %s12, 1
          %s135 = scalar_select %p134, %s12, 1
          %s136 = smul.addr %s135, 4
          %s137 = scalar_lea.vmem %s0, %s136
        $region28: #{projection_forward_t.1} parent=23 // pred_fallthru
          _
      $region24: #{projection_forward_t.1} parent=5 // pred_fallthru
        _
      %p138 = scmp.le.s32.totalorder 1, %s12
      %p139 = scmp.lt.s32.totalorder %s12, 3
      %p140 = pnand %p138, %p139
      %p141 = pneg %p140
      // Predicated region
      $region29: #{projection_forward_t.1} parent=5 // pred_check
        _
      $region30: #{projection_forward_t.1} parent=5 // pred_check_branch
        %143 = sbr.rel (%p140) target = $region32
      $region31: #{projection_forward_t.1} parent=5 // pred_region
        %s144 = ssub.s32 %s12, 1
        %p145 = scmp.lt.s32.totalorder %s17, 1
        %s146 = scalar_select %p145, %s17, 1
        %s147 = smul.addr %s146, 4
        %s148 = scalar_lea.vmem %s0, %s147
        %p149 = pneg %p38
        %p150 = pneg %p35
        %p151 = pneg %p59
        %p152 = pneg %p56
        %p153 = pneg %p80
        %p154 = pneg %p77
        %p155 = pneg %p106
        %p156 = pneg %p103
        %s157 = sand.u32 %s93, 1
        %s158 = scalar_lea.sflag [#allocation3], %s157
        %s159 = sand.u32 %s93, 1
        %s160 = smul.addr %s159, 8
        %s161 = scalar_lea.vmem [#allocation2], %s160
        %p162 = scmp.lt.s32.totalorder %s17, 1
        %s163 = scalar_select %p162, %s17, 1
        %s164 = smul.addr %s163, 4
        %s165 = scalar_lea.vmem %s0, %s164
        %v167 = vld [vmem:[%s165] sm:$0xf]
        %v168 = vld [vmem:[%s1] sm:$0xf]
        %v169 = vld [vmem:[%s1 + $0x4] sm:$0xf]
        %v170 = vld [vmem:[%s1 + $0x8] sm:$0xf]
        %v171 = vld [vmem:[%s1 + $0xc] sm:$0xf]
        %v172 = vld [vmem:[%s2] sm:$0x1]
        %v174 = vlaneseq
        %v175 = vshrl.u32 %v174, 7
        %v176 = vsub.s32 0, %v175
        %v177 = vrot.slane %v172, %v176
        %v183 = vunpack.c.l.b16 %v168
        %v184 = vunpack.c.l.b16 %v169
        %v185 = vunpack.c.l.b16 %v170
        %v186 = vunpack.c.l.b16 %v171
        %v187 = vpack.c.b16 %v184, %v183
        %v188 = vpack.c.b16 %v186, %v185
        %vm191 = vcmask 261120
        %v193 = vsel %vm191, %v167, 0
        %195 = vmatprep.subr.bf16.mxu0 0
        %196 = vmatpush1.bf16.msra.mxu0 %v187
        %197 = vmatprep.subr.bf16.mxu0 0
        %198 = vmatpush1.bf16.msra.mxu0 %v188
        %199 = vmatprep.subr.bf16.mxu0 0
        %200 = vmatpush1.bf16.msra.mxu0 0
        %201 = vmatprep.subr.bf16.mxu0 0
        %202 = vmatpush1.bf16.msra.mxu0 0
        %203 = vmatprep.subr.bf16.mxu0 0
        %204 = vmatpush1.bf16.msra.mxu0 0
        %205 = vmatprep.subr.bf16.mxu0 0
        %206 = vmatpush1.bf16.msra.mxu0 0
        %207 = vmatprep.subr.bf16.mxu0 0
        %208 = vmatpush1.bf16.msra.mxu0 0
        %209 = vmatprep.subr.bf16.mxu0 0
        %210 = vmatpush1.bf16.msra.mxu0 0
        %211 = vmatprep.subr.bf16.mxu0 0
        %212 = vmatpush1.bf16.msra.mxu0 0
        %213 = vmatprep.subr.bf16.mxu0 0
        %214 = vmatpush1.bf16.msra.mxu0 0
        %215 = vmatprep.subr.bf16.mxu0 0
        %216 = vmatpush1.bf16.msra.mxu0 0
        %217 = vmatprep.subr.bf16.mxu0 0
        %218 = vmatpush1.bf16.msra.mxu0 0
        %219 = vmatprep.subr.bf16.mxu0 0
        %220 = vmatpush1.bf16.msra.mxu0 0
        %221 = vmatprep.subr.bf16.mxu0 0
        %222 = vmatpush1.bf16.msra.mxu0 0
        %223 = vmatprep.subr.bf16.mxu0 0
        %224 = vmatpush1.bf16.msra.mxu0 0
        %225 = vmatprep.subr.bf16.mxu0 0
        %226 = vmatpush1.bf16.msra.mxu0 0
        %227 = vmatprep.mubr.bf16.mxu0 0
        %228 = vmatmul.mubr.bf16.gmra.mrb[0].mxu0 %v193
        %v229 = vpop.f32.mrb[0].mxu0
        %v230 = vadd.f32 %v177, %v229
        %v231 = vpop.f32.mrb[0].mxu0
        %v232 = vpop.f32.mrb[0].mxu0
        %v233 = vpop.f32.mrb[0].mxu0
        %234 = vdwg.mxu0
        %235 = vmax.xlane.f32.xlu0 %v230
        %v236 = vpop.xlane.xlu0 %235
        %v237 = vsub.f32 %v230, %v236
        %v238 = vmul.f32 %v237, 1.442695
        %v239 = vpow.pop %v238
        %240 = vadd.xlane.f32.xlu0 %v239
        %v241 = vpop.xlane.xlu0 %240
        %v242 = vlog2.pop %v241
        %v243 = vmul.f32 %v242, 0.6931472
        %v244 = vadd.f32 %v236, %v243
        %v245 = vsub.f32 %v230, %v244
        %246 = vst [vmem:[%s161] sm:$0xff] %v245
        %s247 = sand.u32 %s93, 1
        %s248 = scalar_lea.sflag [#allocation3], %s247
        %s249 = sand.u32 %s93, 1
        %s250 = smul.addr %s249, 8
        %s251 = scalar_lea.vmem [#allocation2], %s250
        // Predicated region
        $region33: #{projection_forward_t.1} parent=31 // pred_check
          %p252 = pneg %p103
        $region34: #{projection_forward_t.1} parent=31 // pred_check_branch
          %254 = sbr.rel (%p252) target = $region36
        $region35: #{projection_forward_t.1} parent=31 // pred_region
          %s256 = ssub.s32 128, 128
          %257 = vsyncadd %s248, %s256
          %s258 = smul.addr %s17, 128
          %s259 = scalar_lea.hbm %s3, %s258
          %s261 = sshll.u32 %s251, 4
          %s262 = int_to_ptr.vmem [resolvable:$true] %s261
          %264 = dma.vmem_to_hbm [thread:$0]  %s262, 128, %s259, %s248
        $region36: #{projection_forward_t.1} parent=31 // pred_fallthru
          _
      $region32: #{projection_forward_t.1} parent=5 // pred_fallthru
        _
      %p265 = scmp.le.s32.totalorder 2, %s12
      // Predicated region
      $region37: #{projection_forward_t.1} parent=5 // pred_check
        %p266 = pneg %p265
      $region38: #{projection_forward_t.1} parent=5 // pred_check_branch
        %268 = sbr.rel (%p266) target = $region40
      $region39: #{projection_forward_t.1} parent=5 // pred_region
        %s269 = ssub.s32 %s12, 2
        // Predicated region
        $region41: #{projection_forward_t.1} parent=39 // pred_check
          %p270 = pneg %p109
        $region42: #{projection_forward_t.1} parent=39 // pred_check_branch
          %272 = sbr.rel (%p270) target = $region44
        $region43: #{projection_forward_t.1} parent=39 // pred_region
          %s273 = sand.u32 %s94, 1
          %s274 = scalar_lea.sflag [#allocation3], %s273
          %s275 = sand.u32 %s94, 1
          %s276 = smul.addr %s275, 8
          %s277 = scalar_lea.vmem [#allocation2], %s276
          %278 = dma.done %s274, 128
        $region44: #{projection_forward_t.1} parent=39 // pred_fallthru
          _
      $region40: #{projection_forward_t.1} parent=5 // pred_fallthru
        _
    $region6: #{projection_forward_t.1} parent=1 // loop_footer
      %s16 = sadd.s32 1, %s12
    $region7: #{projection_forward_t.1} parent=1 // loop_footer_branch
      %11 = sbr.rel target = $region3
    $region8: #{projection_forward_t.1} parent=1 // loop_exit
      _
    %279 = vsyncpa [#allocation3], 1
    %s280 = scalar_lea.sflag [#allocation3], 1
    %281 = vsyncpa %s280, 1

</llo_original>
